<compile_context>
chip_gen: v7x
topology: tpu7x:2x2x1
jax: 0.10.0
libtpu: 0.0.40
codegen_flags: <defaults>
</compile_context>

<pallas_src>
import functools
import math

import jax
import jax.numpy as jnp
from jax import lax
from jax.experimental import pallas as pl
from jax.experimental.pallas import tpu as pltpu


def _nll_sum_kernel(tgt_ref, x_ref, out_ref, row_acc_ref):
    """One grid step over a (row_tile, V) tile of log-probs.

    Steady state (VPU + XLU only): one-hot select of the target column in the
    input's native dtype, lane-reduce along V, accumulate the (row_tile, 1)
    column in f32.  Epilogue (last inner step): reduce the tiny accumulator to
    a scalar, negate, store the per-split partial loss.
    """
    inner = pl.program_id(1)

    @pl.when(inner == 0)
    def _zero():
        row_acc_ref[...] = jnp.zeros_like(row_acc_ref)

    x = x_ref[...]                                   # (TN, V), native dtype
    tgt = tgt_ref[...]                               # (TN, 1) int32; -1 = ignore
    tn, v = x.shape

    col = lax.broadcasted_iota(jnp.int32, (tn, v), 1)
    mask = col == tgt                                # never matches sentinel -1
    picked = jnp.where(mask, x, jnp.array(0, x.dtype))
    # One nonzero per row at most -> reduction is exact in any dtype.
    row_sum = jnp.sum(picked, axis=-1, keepdims=True).astype(jnp.float32)
    row_acc_ref[...] += row_sum

    @pl.when(inner == pl.num_programs(1) - 1)
    def _finalize():
        out_ref[...] = jnp.reshape(-jnp.sum(row_acc_ref[...]), (1, 1, 1))


def nll_loss_sum(output, target, *, ignore_index, row_tile=None):
    """Pallas implementation of nn.NLLLoss(ignore_index=..., reduction='sum').

    output: (..., V) float log-probabilities (f32 or bf16; accumulated in f32).
    target: (...,)   integer class ids; ids == ignore_index contribute 0.
    Precondition: valid ids lie in [0, V).  Out-of-range ids silently
    contribute 0 (PyTorch would raise) -- documented rather than checked.
    Returns a 0-d float32 scalar (sum reduction).
    """
    V = output.shape[-1]
    N = math.prod(output.shape[:-1])

    x = output.reshape(N, V)
    tgt = target.reshape(N, 1).astype(jnp.int32)
    # Fold ignore_index into a sentinel column index that can never match.
    tgt = jnp.where(tgt == jnp.int32(ignore_index), jnp.int32(-1), tgt)

    itemsize = jnp.dtype(x.dtype).itemsize
    # Packed-sublane multiple for the input dtype: 8 (f32), 16 (bf16), 32 (8-bit).
    sub_mult = 8 * max(1, 4 // itemsize)

    if row_tile is None:
        # ~8 MiB input blocks: per-step grid overhead (~0.35 us) stays <10% of
        # the HBM stream time on every generation.  With the tiny accumulator,
        # double-buffered inputs fit comfortably in scoped VMEM.
        target_block_bytes = 8 * 1024 * 1024
        row_tile = max(sub_mult,
                       (target_block_bytes // (V * itemsize)) // sub_mult * sub_mult)
    # Never exceed the (sub_mult-rounded) problem size.
    row_tile = int(min(row_tile, max(sub_mult, -(-N // sub_mult) * sub_mult)))
    assert row_tile % sub_mult == 0

    n_blocks = -(-N // row_tile)
    # Two-way split so both TensorCores work on v7x; no-op cost on 1-TC chips.
    n_split = 2 if n_blocks >= 2 else 1
    n_blocks_pad = -(-n_blocks // n_split) * n_split
    inner_steps = n_blocks_pad // n_split
    n_pad = n_blocks_pad * row_tile

    pad = n_pad - N
    if pad:
        # Padded rows carry sentinel -1 -> contribute exactly 0 to the loss.
        x = jnp.concatenate([x, jnp.zeros((pad, V), x.dtype)], axis=0)
        tgt = jnp.concatenate([tgt, jnp.full((pad, 1), -1, jnp.int32)], axis=0)

    # VMEM budget: double-buffered log-prob blocks + targets + tiny scratch.
    block_bytes = row_tile * V * itemsize
    needed = 2 * block_bytes + 2 * row_tile * 4 + row_tile * 4 + (1 << 20)
    vmem_limit = int(min(64 * 1024 * 1024, max(32 * 1024 * 1024, needed)))

    partials = pl.pallas_call(
        _nll_sum_kernel,
        out_shape=jax.ShapeDtypeStruct((n_split, 1, 1), jnp.float32),
        grid_spec=pltpu.PrefetchScalarGridSpec(
            num_scalar_prefetch=0,
            grid=(n_split, inner_steps),
            in_specs=[
                pl.BlockSpec((row_tile, 1),
                             lambda p, i: (p * inner_steps + i, 0)),   # targets
                pl.BlockSpec((row_tile, V),
                             lambda p, i: (p * inner_steps + i, 0)),   # log-probs
            ],
            out_specs=pl.BlockSpec((1, 1, 1), lambda p, i: (p, 0, 0)),
            scratch_shapes=[pltpu.VMEM((row_tile, 1), jnp.float32)],
        ),
        compiler_params=pltpu.CompilerParams(
            dimension_semantics=("parallel", "arbitrary"),
            vmem_limit_bytes=vmem_limit,
        ),
    )(tgt, x)

    return jnp.sum(partials)


def _reference_nll(output, target, *, ignore_index):
    """Pure-JAX reference mirroring nn.NLLLoss(reduction='sum')."""
    V = output.shape[-1]
    x = output.reshape(-1, V).astype(jnp.float32)
    t = target.reshape(-1).astype(jnp.int32)
    keep = t != ignore_index
    safe_t = jnp.where(keep, t, 0)
    picked = jnp.take_along_axis(x, safe_t[:, None], axis=1)[:, 0]
    return -jnp.sum(jnp.where(keep, picked, 0.0))


if __name__ == "__main__":
    ignore_index = 0  # padding id (a valid class index, as in typical usage)

    key = jax.random.PRNGKey(0)
    k1, k2, k3, k4, k5, k6 = jax.random.split(key, 6)

    # Small case (single block, single split).
    B, S, V = 2, 8, 128
    logits = jax.random.normal(k1, (B, S, V), dtype=jnp.float32)
    output = jax.nn.log_softmax(logits, axis=-1)
    target = jax.random.randint(k2, (B, S), 0, V, dtype=jnp.int32)
    target = target.at[0, 0].set(ignore_index).at[1, 3].set(ignore_index)

    loss = jax.block_until_ready(
        nll_loss_sum(output, target, ignore_index=ignore_index))
    ref = _reference_nll(output, target, ignore_index=ignore_index)
    assert jnp.allclose(loss, ref, rtol=1e-5, atol=1e-4), (loss, ref)

    # Larger case exercising the multi-step grid, the 2-way parallel split,
    # the running f32 accumulator across steps, and the sentinel row padding.
    B2, S2 = 4, 509  # N = 2036, not a multiple of row_tile -> padding path
    logits2 = jax.random.normal(k3, (B2, S2, V), dtype=jnp.float32)
    output2 = jax.nn.log_softmax(logits2, axis=-1)
    target2 = jax.random.randint(k4, (B2, S2), 0, V, dtype=jnp.int32)
    target2 = target2.at[0, 5].set(ignore_index).at[3, 17].set(ignore_index)

    loss2 = jax.block_until_ready(
        nll_loss_sum(output2, target2, ignore_index=ignore_index, row_tile=128))
    ref2 = _reference_nll(output2, target2, ignore_index=ignore_index)
    assert jnp.allclose(loss2, ref2, rtol=1e-5, atol=1e-3), (loss2, ref2)

    # bf16 case: native-dtype select/reduce path (exact: one-hot mask), f32 acc.
    B3, S3 = 2, 257
    logits3 = jax.random.normal(k5, (B3, S3, V), dtype=jnp.float32)
    output3 = jax.nn.log_softmax(logits3, axis=-1).astype(jnp.bfloat16)
    target3 = jax.random.randint(k6, (B3, S3), 0, V, dtype=jnp.int32)
    target3 = target3.at[0, 1].set(ignore_index).at[1, 250].set(ignore_index)

    loss3 = jax.block_until_ready(
        nll_loss_sum(output3, target3, ignore_index=ignore_index, row_tile=64))
    ref3 = _reference_nll(output3, target3, ignore_index=ignore_index)
    assert jnp.allclose(loss3, ref3, rtol=1e-3, atol=1e-2), (loss3, ref3)

    print("KERNEL_OK")
</pallas_src>

<mosaic_0001>
module attributes {stable_mosaic.version = 11 : i64} {
  func.func @_nll_sum_kernel(%arg0: i32, %arg1: i32, %arg2: memref<16x1xi32, #tpu.memory_space<vmem>>, %arg3: memref<16x128xf32, #tpu.memory_space<vmem>>, %arg4: memref<1x1x1xf32, #tpu.memory_space<vmem>>, %arg5: memref<16x1xf32, #tpu.memory_space<vmem>>) attributes {dimension_semantics = [#tpu.dimension_semantics<parallel>, #tpu.dimension_semantics<arbitrary>], iteration_bounds = array<i64: 1, 1>, scalar_prefetch = 0 : i64, scratch_operands = 1 : i64, tpu.core_type = #tpu.core_type<tc>, window_params = [{transform_indices = @transform_0, window_bounds = array<i64: 16, 1>}, {transform_indices = @transform_1, window_bounds = array<i64: 16, 128>}, {transform_indices = @transform_2, window_bounds = array<i64: 1, 1, 1>}]} {
    %c0_i32 = arith.constant 0 : i32
    %0 = arith.cmpi eq, %arg1, %c0_i32 : i32
    %1 = arith.extui %0 : i1 to i32
    %c0_i32_0 = arith.constant 0 : i32
    %2 = arith.cmpi ne, %1, %c0_i32_0 : i32
    scf.if %2 {
      %cst_11 = arith.constant 0.000000e+00 : f32
      %18 = vector.broadcast %cst_11 : f32 to vector<16x1xf32>
      %c0_12 = arith.constant 0 : index
      %c0_13 = arith.constant 0 : index
      %19 = vector.load %arg5[%c0_12, %c0_13] : memref<16x1xf32, #tpu.memory_space<vmem>>, vector<16x1xf32>
      tpu.vector_store %arg5[%c0_12, %c0_13], %18 {strides = array<i32>} : memref<16x1xf32, #tpu.memory_space<vmem>>, vector<16x1xf32>,
    } else {
    }
    %c0 = arith.constant 0 : index
    %c0_1 = arith.constant 0 : index
    %3 = vector.load %arg3[%c0, %c0_1] : memref<16x128xf32, #tpu.memory_space<vmem>>, vector<16x128xf32>
    %c0_2 = arith.constant 0 : index
    %c0_3 = arith.constant 0 : index
    %4 = vector.load %arg2[%c0_2, %c0_3] : memref<16x1xi32, #tpu.memory_space<vmem>>, vector<16x1xi32>
    %5 = tpu.iota {dimensions = array<i32: 1>} : vector<16x128xi32>
    %6 = vector.broadcast %4 : vector<16x1xi32> to vector<16x128xi32>
    %7 = arith.cmpi eq, %5, %6 : vector<16x128xi32>
    %cst = arith.constant 0.000000e+00 : f32
    %8 = vector.broadcast %cst : f32 to vector<16x128xf32>
    %9 = arith.select %7, %3, %8 : vector<16x128xi1>, vector<16x128xf32>
    %cst_4 = arith.constant dense<0.000000e+00> : vector<16xf32>
    %10 = vector.multi_reduction <add>, %9, %cst_4 [1] : vector<16x128xf32> to vector<16xf32>
    %11 = vector.shape_cast %10 : vector<16xf32> to vector<16x1xf32>
    %c0_5 = arith.constant 0 : index
    %c0_6 = arith.constant 0 : index
    %12 = vector.load %arg5[%c0_5, %c0_6] : memref<16x1xf32, #tpu.memory_space<vmem>>, vector<16x1xf32>
    %13 = arith.addf %12, %11 : vector<16x1xf32>
    %c0_7 = arith.constant 0 : index
    %c0_8 = arith.constant 0 : index
    %14 = vector.load %arg5[%c0_7, %c0_8] : memref<16x1xf32, #tpu.memory_space<vmem>>, vector<16x1xf32>
    tpu.vector_store %arg5[%c0_7, %c0_8], %13 {strides = array<i32>} : memref<16x1xf32, #tpu.memory_space<vmem>>, vector<16x1xf32>,
    %c0_i32_9 = arith.constant 0 : i32
    %15 = arith.cmpi eq, %arg1, %c0_i32_9 : i32
    %16 = arith.extui %15 : i1 to i32
    %c0_i32_10 = arith.constant 0 : i32
    %17 = arith.cmpi ne, %16, %c0_i32_10 : i32
    scf.if %17 {
      %c0_11 = arith.constant 0 : index
      %c0_12 = arith.constant 0 : index
      %18 = vector.load %arg5[%c0_11, %c0_12] : memref<16x1xf32, #tpu.memory_space<vmem>>, vector<16x1xf32>
      %19 = vector.shape_cast %18 : vector<16x1xf32> to vector<1x16x1xf32>
      %cst_13 = arith.constant dense<0.000000e+00> : vector<1xf32>
      %20 = vector.multi_reduction <add>, %19, %cst_13 [1, 2] : vector<1x16x1xf32> to vector<1xf32>
      %21 = vector.shape_cast %20 : vector<1xf32> to vector<1x1x1xf32>
      %22 = vector.extract %21[0, 0, 0] : f32 from vector<1x1x1xf32>
      %cst_14 = arith.constant 0.000000e+00 : f32
      %23 = arith.subf %cst_14, %22 : f32
      %24 = vector.broadcast %23 : f32 to vector<1x1x1xf32>
      %c0_15 = arith.constant 0 : index
      %c0_16 = arith.constant 0 : index
      %c0_17 = arith.constant 0 : index
      %25 = vector.load %arg4[%c0_15, %c0_16, %c0_17] : memref<1x1x1xf32, #tpu.memory_space<vmem>>, vector<1x1x1xf32>
      tpu.vector_store %arg4[%c0_15, %c0_16, %c0_17], %24 {strides = array<i32>} : memref<1x1x1xf32, #tpu.memory_space<vmem>>, vector<1x1x1xf32>,
    } else {
    }
    return
  }
  func.func @transform_0(%arg0: i32, %arg1: i32) -> (i32, i32) {
    %c1_i32 = arith.constant 1 : i32
    %0 = arith.muli %arg0, %c1_i32 : i32
    %1 = arith.addi %0, %arg1 : i32
    %c0_i32 = arith.constant 0 : i32
    %c0_i32_0 = arith.constant 0 : i32
    return %1, %c0_i32 : i32, i32
  }
  func.func @transform_1(%arg0: i32, %arg1: i32) -> (i32, i32) {
    %c1_i32 = arith.constant 1 : i32
    %0 = arith.muli %arg0, %c1_i32 : i32
    %1 = arith.addi %0, %arg1 : i32
    %c0_i32 = arith.constant 0 : i32
    %c0_i32_0 = arith.constant 0 : i32
    return %1, %c0_i32 : i32, i32
  }
  func.func @transform_2(%arg0: i32, %arg1: i32) -> (i32, i32, i32) {
    %c0_i32 = arith.constant 0 : i32
    %c0_i32_0 = arith.constant 0 : i32
    %c0_i32_1 = arith.constant 0 : i32
    return %arg0, %c0_i32, %c0_i32_0 : i32, i32, i32
  }
}

</mosaic_0001>

<llo_original>
// kernel: tpu_custom_call.1
$region0: #{tpu_custom_call.1}
  #allocation0 [shape = 'u32[]', space=smem, size = 0x4, offset = 0x4, fixed_abs, tag = 'smem constant byte address 0x4 - core index']
  #allocation1 [shape = 'u32[144,128]{1,0:T(1,128)}', space=vmem, size = 0x12000, scoped, tag = 'internal scratch']
  #allocation2 [shape = 'f32[16,1]{1,0:T(8,128)}', space=vmem, size = 0x2000, scoped, tag = 'scratch operand']
  %s0 = inlined_call_operand.vmem [shape: s32[16,1], index: 0, kind: input, shape index: {}]
  %s1 = inlined_call_operand.vmem [shape: f32[16,128], index: 1, kind: input, shape index: {}]
  %s2 = inlined_call_operand.hbm [shape: f32[1,1,1], index: 2, kind: output, shape index: {}]
  %s3 = sld [smem:[#allocation0]]
  $region26: #{tpu_custom_call.1} parent=0
    _
  %s5 = ssub.s32 1, %s3
  %s6 = scalar_select 0, %s5, %s3
  $region1: #{tpu_custom_call.1} parent=0
    #allocation3 [shape = 'u8[512]{0}', space=vmem, size = 0x400, scoped, tag = 'output window, operand 0, single buffered']
    #allocation4 [shape = 's32[1]{0}', space=sflag, size = 0x4, scoped, tag = 'scoped memory for tpu_custom_call.1']
    %7 = vsyncpa [#allocation4], 0
    // Predicated region
    $region2: #{tpu_custom_call.1} parent=1 // pred_check
      _
    $region3: #{tpu_custom_call.1} parent=1 // pred_check_branch
      %9 = sbr.rel (0) target = $region5
    $region4: #{tpu_custom_call.1} parent=1 // pred_region
      %s10 = sadd.s32 0, 0
      %s11 = smul.u32 2, %s10
      %p12 = scmp.lt.s32.totalorder %s11, 1
      %s13 = scalar_select %p12, %s11, 1
      %s14 = smul.addr %s13, 8
      %s15 = scalar_lea.vmem %s0, %s14
      %s16 = sadd.s32 0, 0
      %s17 = smul.u32 2, %s16
    $region5: #{tpu_custom_call.1} parent=1 // pred_fallthru
      _
    // Predicated region
    $region6: #{tpu_custom_call.1} parent=1 // pred_check
      _
    $region7: #{tpu_custom_call.1} parent=1 // pred_check_branch
      %19 = sbr.rel (0) target = $region9
    $region8: #{tpu_custom_call.1} parent=1 // pred_region
      %s20 = sadd.s32 0, 0
      %s21 = smul.u32 2, %s20
      %p22 = scmp.lt.s32.totalorder %s21, 1
      %s23 = scalar_select %p22, %s21, 1
      %s24 = smul.addr %s23, 8
      %s25 = scalar_lea.vmem %s1, %s24
      %s26 = sadd.s32 0, 0
      %s27 = smul.u32 2, %s26
    $region9: #{tpu_custom_call.1} parent=1 // pred_fallthru
      _
    %s28 = sadd.s32 0, 0
    %s29 = smul.u32 2, %s28
    %p30 = scmp.lt.s32.totalorder %s29, 1
    %s31 = scalar_select %p30, %s29, 1
    %s32 = smul.addr %s31, 8
    %s33 = scalar_lea.vmem %s0, %s32
    %s34 = sadd.s32 0, 0
    %s35 = smul.u32 2, %s34
    %p36 = scmp.lt.s32.totalorder %s35, 1
    %s37 = scalar_select %p36, %s35, 1
    %s38 = smul.addr %s37, 8
    %s39 = scalar_lea.vmem %s1, %s38
    %s40 = sadd.s32 0, 0
    %s41 = smul.u32 2, %s40
    %p42 = scmp.lt.s32.totalorder %s41, 1
    %s43 = scalar_select %p42, %s41, 1
    %s44 = smul.addr %s43, 8
    %s45 = scalar_lea.vmem %s0, %s44
    %s46 = sadd.s32 0, 0
    %s47 = smul.u32 2, %s46
    %s48 = sadd.s32 0, 0
    %s49 = smul.u32 2, %s48
    %p50 = scmp.lt.s32.totalorder %s49, 1
    %s51 = scalar_select %p50, %s49, 1
    %s52 = smul.addr %s51, 8
    %s53 = scalar_lea.vmem %s1, %s52
    %s54 = sadd.s32 0, 0
    %s55 = smul.u32 2, %s54
    %p56 = scmp.eq.s32.totalorder 0, 0
    // Predicated region
    $region10: #{tpu_custom_call.1} parent=1 // pred_check
      %p57 = pneg %p56
    $region11: #{tpu_custom_call.1} parent=1 // pred_check_branch
      %59 = sbr.rel (%p57) target = $region13
    $region12: #{tpu_custom_call.1} parent=1 // pred_region
      %vm60 = vcmask 7168
      %61 = vst.msk [vmem:[#allocation2] sm:$0xff] %vm60, 0.0
      %62 = vst.msk [vmem:[#allocation2 + $0x8] sm:$0xff] %vm60, 0.0
    $region13: #{tpu_custom_call.1} parent=1 // pred_fallthru
      _
    %v63 = vld [vmem:[%s53] sm:$0xff]
    %v64 = vld [vmem:[%s53 + $0x8] sm:$0xff]
    %v65 = vld [vmem:[%s45] sm:$0xff]
    %v66 = vld [vmem:[%s45 + $0x8] sm:$0xff]
    %v67 = vlaneseq
    %v68 = vand.u32 %v67, 127
    %69 = vset.pattern.permute.xlu0 0
    %70 = vperm.xlu0 %69, %v65
    %v71 = vpop.permute.xlu0 %70
    %72 = vset.pattern.permute.xlu0 0
    %73 = vperm.xlu0 %72, %v66
    %v74 = vpop.permute.xlu0 %73
    %vm75 = vcmp.eq.s32.totalorder %v68, %v71
    %vm76 = vcmp.eq.s32.totalorder %v68, %v74
    %v77 = vsel %vm75, %v63, 0.0
    %v78 = vsel %vm76, %v64, 0.0
    %79 = vadd.xlane.f32.xlu0 %v77
    %v80 = vpop.xlane.xlu0 %79
    %81 = vadd.xlane.f32.xlu0 %v78
    %v82 = vpop.xlane.xlu0 %81
    %v83 = vld [vmem:[#allocation2] sm:$0xff]
    %v84 = vld [vmem:[#allocation2 + $0x8] sm:$0xff]
    %v85 = vadd.f32 %v83, %v80
    %v86 = vadd.f32 %v84, %v82
    %vm87 = vcmask 7168
    %88 = vst.msk [vmem:[#allocation2] sm:$0xff] %vm87, %v85
    %89 = vst.msk [vmem:[#allocation2 + $0x8] sm:$0xff] %vm87, %v86
    // Predicated region
    $region14: #{tpu_custom_call.1} parent=1 // pred_check
      %p90 = pneg %p56
    $region15: #{tpu_custom_call.1} parent=1 // pred_check_branch
      %92 = sbr.rel (%p90) target = $region17
    $region16: #{tpu_custom_call.1} parent=1 // pred_region
      %v93 = vld [vmem:[#allocation2] sm:$0xff]
      %v94 = vld [vmem:[#allocation2 + $0x8] sm:$0xff]
      %v95 = vsel %vm87, %v93, 0.0
      %v96 = vsel %vm87, %v94, 0.0
      %v97 = vadd.f32 %v95, %v96
      %98 = vadd.xlane.f32.xlu0 %v97
      %v99 = vpop.xlane.xlu0 %98
      %v100 = vrot.slane %v99, 4
      %v101 = vadd.f32 %v99, %v100
      %v102 = vrot.slane %v101, 2
      %v103 = vadd.f32 %v101, %v102
      %v104 = vrot.slane %v103, 1
      %v105 = vadd.f32 %v103, %v104
      %s106 = vtos %v105
      %s107 = ssub.f32 0.0, %s106
      %v108 = vstv %s107
      %vm109 = vcmask 0
      %110 = vst.msk [vmem:[#allocation3] sm:$0x1] %vm109, %v108
    $region17: #{tpu_custom_call.1} parent=1 // pred_fallthru
      _
    // Predicated region
    $region18: #{tpu_custom_call.1} parent=1 // pred_check
      _
    $region19: #{tpu_custom_call.1} parent=1 // pred_check_branch
      %112 = sbr.rel (0) target = $region21
    $region20: #{tpu_custom_call.1} parent=1 // pred_region
      %s114 = ssub.s32 16, 16
      %115 = vsyncadd [#allocation4], %s114
      %s117 = sshll.u32 [#allocation3], 4
      %s118 = int_to_ptr.vmem [resolvable:$true] %s117
      %120 = dma.vmem_to_hbm [thread:$0]  %s118, 16, %s2, [#allocation4]
    $region21: #{tpu_custom_call.1} parent=1 // pred_fallthru
      _
    // Predicated region
    $region22: #{tpu_custom_call.1} parent=1 // pred_check
      _
    $region23: #{tpu_custom_call.1} parent=1 // pred_check_branch
      %122 = sbr.rel (0) target = $region25
    $region24: #{tpu_custom_call.1} parent=1 // pred_region
      %123 = dma.done [#allocation4], 16
    $region25: #{tpu_custom_call.1} parent=1 // pred_fallthru
      _
    %124 = vsyncpa [#allocation4], 1

</llo_original>
